<compile_context>
chip_gen: v5e
topology: v5e:2x2
jax: 0.10.0
libtpu: 0.0.40
codegen_flags: <defaults>
</compile_context>

<pallas_src>
import functools

import jax
import jax.numpy as jnp
from jax import lax
from jax.experimental import pallas as pl
from jax.experimental.pallas import tpu as pltpu

BN_EPS = 1e-5
_LANE = 128
_VMEM_TILE_BUDGET = 24 * 1024 * 1024   # per-step double-buffered tile budget
_VMEM_LIMIT_BYTES = 32 * 1024 * 1024   # explicit scoped-VMEM limit (v5e/v6e/v7x safe)


# --------------------------------------------------------------------------
# Pallas kernel: (patches @ w_scaled) + bias -> LeakyReLU(0.2)
# --------------------------------------------------------------------------
def _fused_conv_bn_lrelu_kernel(x_ref, w_ref, bias_ref, o_ref):
    # x_ref: (tm, K) bf16, w_ref: (K, Npad) bf16 (BN scale folded in, resident),
    # bias_ref: (1, Npad) f32 (resident), o_ref: (tm, Npad).
    y = jnp.dot(x_ref[...], w_ref[...], preferred_element_type=jnp.float32)
    y = y + bias_ref[...]               # folded BatchNorm bias
    y = jnp.maximum(y, 0.2 * y)         # LeakyReLU(0.2): one mul + one max
    o_ref[...] = y.astype(o_ref.dtype)


def _pick_tm(M, K, Npad, out_bytes):
    """Largest M-tile that divides M, fits the VMEM budget, and (when possible)
    leaves at least 2 grid steps so both TensorCores / the pipeline get work."""
    fallback = None
    for tm in (4096, 2048, 1024, 512, 256, 128, 64, 32, 16, 8):
        if tm > M or M % tm:
            continue
        need = (2 * tm * K * 2            # double-buffered bf16 patches tile
                + 2 * tm * Npad * out_bytes  # double-buffered output tile
                + K * Npad * 2            # resident bf16 weight
                + 2 * Npad * 4)           # resident f32 bias
        if need > _VMEM_TILE_BUDGET:
            continue
        if M // tm >= 2:
            return tm
        if fallback is None:
            fallback = tm                 # divides & fits, but single step
    return fallback if fallback is not None else M


def _fused_matmul(patches, wmat, bias, *, out_dtype):
    """patches (M,K) bf16, wmat (K,Npad) bf16, bias (1,Npad) f32 -> (M,Npad)."""
    M, K = patches.shape
    _, Npad = wmat.shape
    out_bytes = jnp.dtype(out_dtype).itemsize
    tm = _pick_tm(M, K, Npad, out_bytes)
    grid = (M // tm,)
    return pl.pallas_call(
        _fused_conv_bn_lrelu_kernel,
        out_shape=jax.ShapeDtypeStruct((M, Npad), out_dtype),
        grid=grid,
        in_specs=[
            pl.BlockSpec((tm, K), lambda i: (i, 0)),
            pl.BlockSpec((K, Npad), lambda i: (0, 0)),   # weight: resident, DMAed once
            pl.BlockSpec((1, Npad), lambda i: (0, 0)),   # bias:   resident, DMAed once
        ],
        out_specs=pl.BlockSpec((tm, Npad), lambda i: (i, 0)),
        compiler_params=pltpu.CompilerParams(
            dimension_semantics=("parallel",),
            vmem_limit_bytes=_VMEM_LIMIT_BYTES,
            # Let XLA fuse the im2col transpose + bf16 cast into the input DMA
            # of operand 0 instead of materializing patches in HBM.
            allow_input_fusion=[True, False, False],
        ),
    )(patches, wmat, bias)


# --------------------------------------------------------------------------
# DiscriminatorBlock forward (NCHW in; NCHW out by default to match PyTorch,
# NHWC out optionally to skip the final transpose when chaining blocks)
# --------------------------------------------------------------------------
def discriminator_block(x, params, k, *, channels_last_out=False,
                        out_dtype=jnp.float32):
    w, gamma, beta, rmean, rvar = params
    B, C, H, W = x.shape
    oc = w.shape[0]
    Ho, Wo = H // k, W // k
    K = C * k * k

    # im2col for stride==kernel convs: reshape/transpose, channels-last rows so
    # the kernel output is lane-dense over output channels.  With
    # allow_input_fusion this is fused into the pallas_call input DMA.
    patches = x.reshape(B, C, Ho, k, Wo, k).transpose(0, 2, 4, 1, 3, 5)
    patches = patches.reshape(B * Ho * Wo, K).astype(jnp.bfloat16)

    # Fold the BatchNorm scale into the conv weight; epilogue keeps only +bias.
    scale = gamma / jnp.sqrt(rvar + BN_EPS)                    # (oc,)
    bias = (beta - rmean * scale)[None, :].astype(jnp.float32)
    wmat = (w.reshape(oc, -1) * scale[:, None]).T.astype(jnp.bfloat16)  # (K, oc)

    # Pad output channels up to a multiple of 128 -> lane-dense unmasked stores.
    n_pad = ((oc + _LANE - 1) // _LANE) * _LANE
    if n_pad != oc:
        wmat = jnp.pad(wmat, ((0, 0), (0, n_pad - oc)))
        bias = jnp.pad(bias, ((0, 0), (0, n_pad - oc)))

    y = _fused_matmul(patches, wmat, bias, out_dtype=out_dtype)  # (M, Npad)
    y = y[:, :oc].reshape(B, Ho, Wo, oc)

    # Dropout2d(p=0.2): identity in eval mode.
    if channels_last_out:
        return y                               # NHWC: no output transpose
    return y.transpose(0, 3, 1, 2)             # NCHW: matches the PyTorch module


# --------------------------------------------------------------------------
# Pure-JAX / XLA reference (f32, lax.conv) for correctness checking
# --------------------------------------------------------------------------
def reference_block(x, params, k):
    w, gamma, beta, rmean, rvar = params
    dn = ("NCHW", "OIHW", "NCHW")
    y = lax.conv_general_dilated(x, w, (k, k), "VALID", dimension_numbers=dn)
    scale = gamma / jnp.sqrt(rvar + BN_EPS)
    bias = beta - rmean * scale
    y = y * scale[None, :, None, None] + bias[None, :, None, None]
    return jnp.where(y >= 0.0, y, 0.2 * y)


# --------------------------------------------------------------------------
# Deterministic parameter init (matching nn.Module parameter shapes)
# --------------------------------------------------------------------------
def init_params(key, in_ch, out_ch, k):
    kw, kg, kb, km, kv = jax.random.split(key, 5)
    fan_in = in_ch * k * k
    w = jax.random.normal(kw, (out_ch, in_ch, k, k), jnp.float32) / jnp.sqrt(fan_in)
    gamma = 1.0 + 0.1 * jax.random.normal(kg, (out_ch,), jnp.float32)
    beta = 0.1 * jax.random.normal(kb, (out_ch,), jnp.float32)
    rmean = 0.1 * jax.random.normal(km, (out_ch,), jnp.float32)
    rvar = 1.0 + 0.1 * jax.random.uniform(kv, (out_ch,), jnp.float32)
    return (w, gamma, beta, rmean, rvar)


def _run_case(key, B, in_ch, out_ch, H, W, k, tag):
    kx, kp = jax.random.split(key)
    x = jax.random.normal(kx, (B, in_ch, H, W), jnp.float32)
    params = init_params(kp, in_ch, out_ch, k)

    ref = jax.block_until_ready(reference_block(x, params, k))

    # Default path: NCHW output, matching the PyTorch module exactly.
    fwd = jax.jit(functools.partial(discriminator_block, k=k))
    out = jax.block_until_ready(fwd(x, params))
    assert out.shape == (B, out_ch, H // k, W // k), (tag, out.shape)
    err = float(jnp.max(jnp.abs(out - ref)))
    # bf16 matmul operands vs f32 reference -> loose but meaningful tolerance.
    assert err < 5e-2, (tag, "nchw", err)

    # Channels-last path (preferred when chaining blocks: no output transpose).
    fwd_cl = jax.jit(functools.partial(discriminator_block, k=k,
                                       channels_last_out=True))
    out_cl = jax.block_until_ready(fwd_cl(x, params))
    err_cl = float(jnp.max(jnp.abs(out_cl - ref.transpose(0, 2, 3, 1))))
    assert err_cl < 5e-2, (tag, "nhwc", err_cl)
    return out


if __name__ == "__main__":
    key = jax.random.PRNGKey(0)

    # Primary small case: x = (2, 4, 16, 16), DiscriminatorBlock(4, 32, 2).
    # M=128 -> tm=64 (2 parallel grid steps), oc=32 padded to 128 lanes.
    _run_case(jax.random.fold_in(key, 0), B=2, in_ch=4, out_ch=32,
              H=16, W=16, k=2, tag="small")

    # Second case: resident 512-wide weight, M=1024 -> tm=512 (2 grid steps).
    _run_case(jax.random.fold_in(key, 1), B=4, in_ch=8, out_ch=512,
              H=32, W=32, k=2, tag="tiled")

    print("KERNEL_OK")
</pallas_src>

<mosaic_0001>
module attributes {stable_mosaic.version = 11 : i64} {
  func.func @_fused_conv_bn_lrelu_kernel(%arg0: i32, %arg1: memref<64x16xbf16, #tpu.memory_space<vmem>>, %arg2: memref<16x128xbf16, #tpu.memory_space<vmem>>, %arg3: memref<1x128xf32, #tpu.memory_space<vmem>>, %arg4: memref<64x128xf32, #tpu.memory_space<vmem>>) attributes {dimension_semantics = [#tpu.dimension_semantics<parallel>], iteration_bounds = array<i64: 2>, scalar_prefetch = 0 : i64, scratch_operands = 0 : i64, tpu.core_type = #tpu.core_type<tc>, window_params = [{transform_indices = @transform_0, window_bounds = array<i64: 64, 16>}, {pipeline_mode = #tpu.pipeline_mode<synchronous>, transform_indices = @transform_1, window_bounds = array<i64: 16, 128>}, {pipeline_mode = #tpu.pipeline_mode<synchronous>, transform_indices = @transform_2, window_bounds = array<i64: 1, 128>}, {transform_indices = @transform_3, window_bounds = array<i64: 64, 128>}]} {
    %c0 = arith.constant 0 : index
    %c0_0 = arith.constant 0 : index
    %0 = vector.load %arg1[%c0, %c0_0] : memref<64x16xbf16, #tpu.memory_space<vmem>>, vector<64x16xbf16>
    %c0_1 = arith.constant 0 : index
    %c0_2 = arith.constant 0 : index
    %1 = vector.load %arg2[%c0_1, %c0_2] : memref<16x128xbf16, #tpu.memory_space<vmem>>, vector<16x128xbf16>
    %cst = arith.constant dense<0.000000e+00> : vector<64x128xf32>
    %2 = tpu.matmul %0, %1, %cst {dimension_numbers = #tpu.dot_dimension_numbers<[1], [0], [0], [1], [0, 0, 1, 1], [], []>} : vector<64x16xbf16>, vector<16x128xbf16>, vector<64x128xf32> -> vector<64x128xf32>
    %c0_3 = arith.constant 0 : index
    %c0_4 = arith.constant 0 : index
    %3 = vector.load %arg3[%c0_3, %c0_4] : memref<1x128xf32, #tpu.memory_space<vmem>>, vector<1x128xf32>
    %4 = vector.broadcast %3 : vector<1x128xf32> to vector<64x128xf32>
    %5 = arith.addf %2, %4 : vector<64x128xf32>
    %cst_5 = arith.constant 2.000000e-01 : f32
    %6 = vector.broadcast %cst_5 : f32 to vector<64x128xf32>
    %7 = arith.mulf %6, %5 : vector<64x128xf32>
    %8 = arith.maximumf %5, %7 : vector<64x128xf32>
    %c0_6 = arith.constant 0 : index
    %c0_7 = arith.constant 0 : index
    %9 = vector.load %arg4[%c0_6, %c0_7] : memref<64x128xf32, #tpu.memory_space<vmem>>, vector<64x128xf32>
    tpu.vector_store %arg4[%c0_6, %c0_7], %8 {strides = array<i32>} : memref<64x128xf32, #tpu.memory_space<vmem>>, vector<64x128xf32>,
    return
  }
  func.func @transform_0(%arg0: i32) -> (i32, i32) {
    %c0_i32 = arith.constant 0 : i32
    %c0_i32_0 = arith.constant 0 : i32
    return %arg0, %c0_i32 : i32, i32
  }
  func.func @transform_1(%arg0: i32) -> (i32, i32) {
    %c0_i32 = arith.constant 0 : i32
    %c0_i32_0 = arith.constant 0 : i32
    %c0_i32_1 = arith.constant 0 : i32
    return %c0_i32, %c0_i32_0 : i32, i32
  }
  func.func @transform_2(%arg0: i32) -> (i32, i32) {
    %c0_i32 = arith.constant 0 : i32
    %c0_i32_0 = arith.constant 0 : i32
    %c0_i32_1 = arith.constant 0 : i32
    return %c0_i32, %c0_i32_0 : i32, i32
  }
  func.func @transform_3(%arg0: i32) -> (i32, i32) {
    %c0_i32 = arith.constant 0 : i32
    %c0_i32_0 = arith.constant 0 : i32
    return %arg0, %c0_i32 : i32, i32
  }
}

</mosaic_0001>

<llo_original>
// kernel: discriminator_block.1
$region0: #{discriminator_block.1}
  #allocation0 [shape = 'u32[]', space=smem, size = 0x4, offset = 0x4, fixed_abs, tag = 'smem constant byte address 0x4 - core index']
  #allocation1 [shape = 'u32[72,128]{1,0:T(1,128)}', space=vmem, size = 0x9000, scoped, tag = 'internal scratch']
  %s0 = inlined_call_operand.vmem [shape: bf16[128,16], index: 0, kind: input, shape index: {}]
  %s1 = inlined_call_operand.vmem [shape: bf16[16,128], index: 1, kind: input, shape index: {}]
  %s2 = inlined_call_operand.vmem [shape: f32[1,128], index: 2, kind: input, shape index: {}]
  %s3 = inlined_call_operand.hbm [shape: f32[128,128], index: 3, kind: output, shape index: {}]
  %s4 = sld [smem:[#allocation0]]
  $region45: #{discriminator_block.1} parent=0
    _
  %s6 = ssub.s32 1, %s4
  %s7 = scalar_select 0, %s6, %s4
  $region1: #{discriminator_block.1} parent=0
    #allocation2 [shape = 'u8[65536]{0}', space=vmem, size = 0x10000, scoped, tag = 'output window, operand 0']
    #allocation3 [shape = 's32[2]{0}', space=sflag, size = 0x8, scoped, tag = 'scoped memory for discriminator_block.1']
    %8 = vsyncpa [#allocation3], 0
    %s9 = scalar_lea.sflag [#allocation3], 1
    %10 = vsyncpa %s9, 0
    loop: start=0, step=1, limit=4
    $region2: #{discriminator_block.1} parent=1 // loop_pre_header
      _
    $region3: #{discriminator_block.1} parent=1 // loop_header
      %s12 = sphi 0, %s16
      %p13 = scmp.ge.s32.totalorder %s12, 4
      %s22 = sphi 0, %s24
      %s25 = sphi 0, %s22
      %s26 = sphi 0, %s25
      %s42 = sphi 0, %s26
      %s46 = sphi 0, %s46
      %s48 = sphi 0, %s46
      %s49 = sphi 0, %s48
      %s63 = sphi 0, %s49
      %s67 = sphi 0, %s67
      %s69 = sphi 0, %s67
      %s70 = sphi 0, %s69
      %s84 = sphi 0, %s70
      %s90 = sphi 0, %s92
      %s93 = sphi 0, %s90
      %s94 = sphi 0, %s93
      %s110 = sphi 0, %s94
    $region4: #{discriminator_block.1} parent=1 // loop_header_branch
      %15 = sbr.rel (%p13) target = $region8
    $region5: #{discriminator_block.1} parent=1 // loop_body
      %s17 = ssub.s32 %s12, 1
      %s18 = ssub.s32 %s12, 2
      %s19 = sadd.s32 %s12, 1
      %s20 = ssub.s32 %s12, %s19
      %p21 = scmp.eq.s32.totalorder %s20, 0
      %s23 = sadd.s32 %s22, 1
      %s24 = scalar_select %p21, %s22, %s23
      %p27 = pneg %p21
      %p28 = scmp.eq.s32.totalorder %s12, 1
      %p29 = por %p27, %p28
      %p30 = scmp.ne.s32.totalorder %s22, %s25
      %p31 = scmp.eq.s32.totalorder %s12, 0
      %p32 = por %p30, %p31
      %p33 = scmp.ne.s32.totalorder %s22, %s25
      %p34 = scmp.eq.s32.totalorder %s17, 1
      %p35 = por %p33, %p34
      %p36 = scmp.ne.s32.totalorder %s25, %s26
      %p37 = scmp.eq.s32.totalorder %s17, 0
      %p38 = por %p36, %p37
      %p39 = scmp.ne.s32.totalorder %s25, %s26
      %p40 = scmp.eq.s32.totalorder %s18, 1
      %p41 = por %p39, %p40
      %p43 = scmp.ne.s32.totalorder %s26, %s42
      %p44 = scmp.eq.s32.totalorder %s18, 0
      %p45 = por %p43, %p44
      %s47 = sadd.s32 %s46, 1
      %p50 = scmp.eq.s32.totalorder %s12, 1
      %p51 = scmp.ne.s32.totalorder %s46, %s48
      %p52 = scmp.eq.s32.totalorder %s12, 0
      %p53 = por %p51, %p52
      %p54 = scmp.ne.s32.totalorder %s46, %s48
      %p55 = scmp.eq.s32.totalorder %s17, 1
      %p56 = por %p54, %p55
      %p57 = scmp.ne.s32.totalorder %s48, %s49
      %p58 = scmp.eq.s32.totalorder %s17, 0
      %p59 = por %p57, %p58
      %p60 = scmp.ne.s32.totalorder %s48, %s49
      %p61 = scmp.eq.s32.totalorder %s18, 1
      %p62 = por %p60, %p61
      %p64 = scmp.ne.s32.totalorder %s49, %s63
      %p65 = scmp.eq.s32.totalorder %s18, 0
      %p66 = por %p64, %p65
      %s68 = sadd.s32 %s67, 1
      %p71 = scmp.eq.s32.totalorder %s12, 1
      %p72 = scmp.ne.s32.totalorder %s67, %s69
      %p73 = scmp.eq.s32.totalorder %s12, 0
      %p74 = por %p72, %p73
      %p75 = scmp.ne.s32.totalorder %s67, %s69
      %p76 = scmp.eq.s32.totalorder %s17, 1
      %p77 = por %p75, %p76
      %p78 = scmp.ne.s32.totalorder %s69, %s70
      %p79 = scmp.eq.s32.totalorder %s17, 0
      %p80 = por %p78, %p79
      %p81 = scmp.ne.s32.totalorder %s69, %s70
      %p82 = scmp.eq.s32.totalorder %s18, 1
      %p83 = por %p81, %p82
      %p85 = scmp.ne.s32.totalorder %s70, %s84
      %p86 = scmp.eq.s32.totalorder %s18, 0
      %p87 = por %p85, %p86
      %s88 = ssub.s32 %s12, %s19
      %p89 = scmp.eq.s32.totalorder %s88, 0
      %s91 = sadd.s32 %s90, 1
      %s92 = scalar_select %p89, %s90, %s91
      %p95 = pneg %p89
      %p96 = scmp.eq.s32.totalorder %s12, 1
      %p97 = por %p95, %p96
      %p98 = scmp.ne.s32.totalorder %s90, %s93
      %p99 = scmp.eq.s32.totalorder %s12, 0
      %p100 = por %p98, %p99
      %p101 = scmp.ne.s32.totalorder %s90, %s93
      %p102 = scmp.eq.s32.totalorder %s17, 1
      %p103 = por %p101, %p102
      %p104 = scmp.ne.s32.totalorder %s93, %s94
      %p105 = scmp.eq.s32.totalorder %s17, 0
      %p106 = por %p104, %p105
      %p107 = scmp.ne.s32.totalorder %s93, %s94
      %p108 = scmp.eq.s32.totalorder %s18, 1
      %p109 = por %p107, %p108
      %p111 = scmp.ne.s32.totalorder %s94, %s110
      %p112 = scmp.eq.s32.totalorder %s18, 0
      %p113 = por %p111, %p112
      %p114 = scmp.le.s32.totalorder 1, %s12
      %p115 = scmp.lt.s32.totalorder %s12, 3
      %p116 = pnand %p114, %p115
      %p117 = pneg %p116
      // Predicated region
      $region9: #{discriminator_block.1} parent=5 // pred_check
        _
      $region10: #{discriminator_block.1} parent=5 // pred_check_branch
        %119 = sbr.rel (%p116) target = $region12
      $region11: #{discriminator_block.1} parent=5 // pred_region
        %s120 = ssub.s32 %s12, 1
        // Predicated region
        $region13: #{discriminator_block.1} parent=11 // pred_check
          %p121 = pneg %p59
        $region14: #{discriminator_block.1} parent=11 // pred_check_branch
          %123 = sbr.rel (%p121) target = $region16
        $region15: #{discriminator_block.1} parent=11 // pred_region
          _
        $region16: #{discriminator_block.1} parent=11 // pred_fallthru
          _
        // Predicated region
        $region17: #{discriminator_block.1} parent=11 // pred_check
          %p124 = pneg %p80
        $region18: #{discriminator_block.1} parent=11 // pred_check_branch
          %126 = sbr.rel (%p124) target = $region20
        $region19: #{discriminator_block.1} parent=11 // pred_region
          _
        $region20: #{discriminator_block.1} parent=11 // pred_fallthru
          _
      $region12: #{discriminator_block.1} parent=5 // pred_fallthru
        _
      %p127 = scmp.lt.s32.totalorder %s12, 2
      // Predicated region
      $region21: #{discriminator_block.1} parent=5 // pred_check
        %p128 = pneg %p127
      $region22: #{discriminator_block.1} parent=5 // pred_check_branch
        %130 = sbr.rel (%p128) target = $region24
      $region23: #{discriminator_block.1} parent=5 // pred_region
        // Predicated region
        $region25: #{discriminator_block.1} parent=23 // pred_check
          %p131 = pneg %p32
        $region26: #{discriminator_block.1} parent=23 // pred_check_branch
          %133 = sbr.rel (%p131) target = $region28
        $region27: #{discriminator_block.1} parent=23 // pred_region
          %s134 = smul.u32 8, %s12
          %p135 = scmp.lt.s32.totalorder %s134, 15
          %s136 = scalar_select %p135, %s134, 15
          %s137 = smul.addr %s136, 4
          %s138 = scalar_lea.vmem %s0, %s137
          %s139 = smul.u32 8, %s12
        $region28: #{discriminator_block.1} parent=23 // pred_fallthru
          _
      $region24: #{discriminator_block.1} parent=5 // pred_fallthru
        _
      %p140 = scmp.le.s32.totalorder 1, %s12
      %p141 = scmp.lt.s32.totalorder %s12, 3
      %p142 = pnand %p140, %p141
      %p143 = pneg %p142
      // Predicated region
      $region29: #{discriminator_block.1} parent=5 // pred_check
        _
      $region30: #{discriminator_block.1} parent=5 // pred_check_branch
        %145 = sbr.rel (%p142) target = $region32
      $region31: #{discriminator_block.1} parent=5 // pred_region
        %s146 = ssub.s32 %s12, 1
        %s147 = smul.u32 8, %s17
        %p148 = scmp.lt.s32.totalorder %s147, 15
        %s149 = scalar_select %p148, %s147, 15
        %s150 = smul.addr %s149, 4
        %s151 = scalar_lea.vmem %s0, %s150
        %p152 = pneg %p38
        %p153 = pneg %p35
        %p154 = pneg %p59
        %p155 = pneg %p56
        %p156 = pneg %p80
        %p157 = pneg %p77
        %p158 = pneg %p106
        %p159 = pneg %p103
        %s160 = sand.u32 %s93, 1
        %s161 = scalar_lea.sflag [#allocation3], %s160
        %s162 = sand.u32 %s93, 1
        %s163 = smul.addr %s162, 64
        %s164 = scalar_lea.vmem [#allocation2], %s163
        %s165 = smul.u32 8, %s17
        %p166 = scmp.lt.s32.totalorder %s165, 15
        %s167 = scalar_select %p166, %s165, 15
        %s168 = smul.addr %s167, 4
        %s169 = scalar_lea.vmem %s0, %s168
        %s170 = smul.u32 8, %s17
        %s171 = smul.u32 8, %s17
        %v173 = vld [vmem:[%s169] sm:$0xf]
        %v174 = vld [vmem:[%s169 + $0x4] sm:$0xf]
        %v175 = vld [vmem:[%s169 + $0x8] sm:$0xf]
        %v176 = vld [vmem:[%s169 + $0xc] sm:$0xf]
        %v177 = vld [vmem:[%s169 + $0x10] sm:$0xf]
        %v178 = vld [vmem:[%s169 + $0x14] sm:$0xf]
        %v179 = vld [vmem:[%s169 + $0x18] sm:$0xf]
        %v180 = vld [vmem:[%s169 + $0x1c] sm:$0xf]
        %v181 = vld [vmem:[%s1] sm:$0xf]
        %v182 = vld [vmem:[%s1 + $0x4] sm:$0xf]
        %v183 = vld [vmem:[%s2] sm:$0x1]
        %v185 = vperm.slane %v183, 0
        %v195 = vunpack.c.l.b16 %v173
        %v196 = vunpack.c.l.b16 %v174
        %v197 = vunpack.c.l.b16 %v175
        %v198 = vunpack.c.l.b16 %v176
        %v199 = vunpack.c.l.b16 %v177
        %v200 = vunpack.c.l.b16 %v178
        %v201 = vunpack.c.l.b16 %v179
        %v202 = vunpack.c.l.b16 %v180
        %v203 = vpack.c.b16 %v196, %v195
        %v204 = vpack.c.b16 %v198, %v197
        %v205 = vpack.c.b16 %v200, %v199
        %v206 = vpack.c.b16 %v202, %v201
        %v209 = vunpack.c.l.b16 %v181
        %v210 = vunpack.c.l.b16 %v182
        %v211 = vpack.c.b16 %v210, %v209
        %vm213 = vcmask 130048
        %v215 = vsel %vm213, %v203, 0
        %v218 = vsel %vm213, %v204, 0
        %v221 = vsel %vm213, %v205, 0
        %v224 = vsel %vm213, %v206, 0
        %226 = vmatpush.bf16.msra.mxu0 0
        %227 = vmatpush.bf16.msra.mxu0 0
        %228 = vmatpush.bf16.msra.mxu0 0
        %229 = vmatpush.bf16.msra.mxu0 0
        %230 = vmatpush.bf16.msra.mxu0 0
        %231 = vmatpush.bf16.msra.mxu0 0
        %232 = vmatpush.bf16.msra.mxu0 0
        %233 = vmatpush.bf16.msra.mxu0 %v211
        %234 = vmatmul.bf16.gmra.mxu0 %v215
        %v235 = vpop.f32.mrf.mxu0
        %v236 = vadd.f32 %v185, %v235
        %v237 = vpop.f32.mrf.mxu0
        %v238 = vadd.f32 %v185, %v237
        %239 = vmatmul.bf16.gmra.mxu0 %v218
        %v240 = vpop.f32.mrf.mxu0
        %v241 = vadd.f32 %v185, %v240
        %v242 = vpop.f32.mrf.mxu0
        %v243 = vadd.f32 %v185, %v242
        %244 = vmatmul.bf16.gmra.mxu0 %v221
        %v245 = vpop.f32.mrf.mxu0
        %v246 = vadd.f32 %v185, %v245
        %v247 = vpop.f32.mrf.mxu0
        %v248 = vadd.f32 %v185, %v247
        %249 = vmatmul.bf16.gmra.mxu0 %v224
        %v250 = vpop.f32.mrf.mxu0
        %v251 = vadd.f32 %v185, %v250
        %v252 = vpop.f32.mrf.mxu0
        %v253 = vadd.f32 %v185, %v252
        %254 = vdwg.mxu0
        %v255 = vmul.f32 %v236, 0.2
        %v256 = vmul.f32 %v238, 0.2
        %v257 = vmul.f32 %v241, 0.2
        %v258 = vmul.f32 %v243, 0.2
        %v259 = vmul.f32 %v246, 0.2
        %v260 = vmul.f32 %v248, 0.2
        %v261 = vmul.f32 %v251, 0.2
        %v262 = vmul.f32 %v253, 0.2
        %v263 = vmax.f32 %v236, %v255
        %v264 = vmax.f32 %v238, %v256
        %v265 = vmax.f32 %v241, %v257
        %v266 = vmax.f32 %v243, %v258
        %v267 = vmax.f32 %v246, %v259
        %v268 = vmax.f32 %v248, %v260
        %v269 = vmax.f32 %v251, %v261
        %v270 = vmax.f32 %v253, %v262
        %271 = vst [vmem:[%s164] sm:$0xff] %v263
        %272 = vst [vmem:[%s164 + $0x8] sm:$0xff] %v264
        %273 = vst [vmem:[%s164 + $0x10] sm:$0xff] %v265
        %274 = vst [vmem:[%s164 + $0x18] sm:$0xff] %v266
        %275 = vst [vmem:[%s164 + $0x20] sm:$0xff] %v267
        %276 = vst [vmem:[%s164 + $0x28] sm:$0xff] %v268
        %277 = vst [vmem:[%s164 + $0x30] sm:$0xff] %v269
        %278 = vst [vmem:[%s164 + $0x38] sm:$0xff] %v270
        %s279 = sand.u32 %s93, 1
        %s280 = scalar_lea.sflag [#allocation3], %s279
        %s281 = sand.u32 %s93, 1
        %s282 = smul.addr %s281, 64
        %s283 = scalar_lea.vmem [#allocation2], %s282
        // Predicated region
        $region33: #{discriminator_block.1} parent=31 // pred_check
          %p284 = pneg %p103
        $region34: #{discriminator_block.1} parent=31 // pred_check_branch
          %286 = sbr.rel (%p284) target = $region36
        $region35: #{discriminator_block.1} parent=31 // pred_region
          %s287 = smul.u32 8, %s17
          %289 = vsyncadd %s280, 0
          %s290 = smul.addr %s287, 8
          %s291 = scalar_lea.hbm %s3, %s290
          %s292 = sshll.u32 %s283, 4
          %s293 = int_to_ptr.vmem [resolvable:$true] %s292
          %s294 = sshll.u32 %s291, 4
          %s295 = int_to_ptr.hbm [resolvable:$true] %s294
          %300 = dma.vmem_to_hbm [thread:$0]  %s293, 1024, %s295, %s280, 128, 128, 8
        $region36: #{discriminator_block.1} parent=31 // pred_fallthru
          _
      $region32: #{discriminator_block.1} parent=5 // pred_fallthru
        _
      %p301 = scmp.le.s32.totalorder 2, %s12
      // Predicated region
      $region37: #{discriminator_block.1} parent=5 // pred_check
        %p302 = pneg %p301
      $region38: #{discriminator_block.1} parent=5 // pred_check_branch
        %304 = sbr.rel (%p302) target = $region40
      $region39: #{discriminator_block.1} parent=5 // pred_region
        %s305 = ssub.s32 %s12, 2
        // Predicated region
        $region41: #{discriminator_block.1} parent=39 // pred_check
          %p306 = pneg %p109
        $region42: #{discriminator_block.1} parent=39 // pred_check_branch
          %308 = sbr.rel (%p306) target = $region44
        $region43: #{discriminator_block.1} parent=39 // pred_region
          %s309 = sand.u32 %s94, 1
          %s310 = scalar_lea.sflag [#allocation3], %s309
          %s311 = sand.u32 %s94, 1
          %s312 = smul.addr %s311, 64
          %s313 = scalar_lea.vmem [#allocation2], %s312
          %315 = dma.done %s310, 1024
        $region44: #{discriminator_block.1} parent=39 // pred_fallthru
          _
      $region40: #{discriminator_block.1} parent=5 // pred_fallthru
        _
    $region6: #{discriminator_block.1} parent=1 // loop_footer
      %s16 = sadd.s32 1, %s12
    $region7: #{discriminator_block.1} parent=1 // loop_footer_branch
      %11 = sbr.rel target = $region3
    $region8: #{discriminator_block.1} parent=1 // loop_exit
      _
    %316 = vsyncpa [#allocation3], 1
    %s317 = scalar_lea.sflag [#allocation3], 1
    %318 = vsyncpa %s317, 1

</llo_original>
